<compile_context>
chip_gen: v5e
topology: v5e:2x2
jax: 0.10.0
libtpu: 0.0.40
codegen_flags: <defaults>
</compile_context>

<pallas_src>
import functools

import jax
import jax.numpy as jnp
from jax import lax
from jax.experimental import pallas as pl
from jax.experimental.pallas import tpu as pltpu


def _round_up(x, m):
    return ((x + m - 1) // m) * m


# --------------------------- fused dense+gelu+LN -> tied projection kernel ---------------------------
def _lm_head_kernel(x_ref, w_ref, b_ref, g_ref, be_ref, emb_ref, dbias_ref,
                    o_ref, h_ref, *, eps):
    # x_ref:   (tm, D)     input row tile
    # w_ref:   (D, D)      dense weight, native [out, in] layout (resident)
    # b_ref/g_ref/be_ref: (1, D) dense bias / LN gamma / LN beta (resident)
    # emb_ref: (tv, D)     embedding tile, native [V, D] layout
    # dbias_ref: (1, tv)   decoder bias tile
    # o_ref:   (tm, tv)    logits tile
    # h_ref:   (tm, D)     VMEM scratch holding the LayerNorm'd hidden tile

    @pl.when(pl.program_id(1) == 0)
    def _():
        # h = x @ W^T   (contract x's D_in with W's 'in' axis; f32 accumulation)
        h = lax.dot_general(
            x_ref[...], w_ref[...],
            dimension_numbers=(((1,), (1,)), ((), ())),
            preferred_element_type=jnp.float32,
        )
        h = h + b_ref[...].astype(jnp.float32)

        # exact (erf-based) gelu, matching torch.nn.functional.gelu default
        h = 0.5 * h * (1.0 + lax.erf(h * jnp.float32(0.7071067811865476)))

        # LayerNorm over last dim — single-pass sums in f32, gamma*rstd folded.
        inv_d = jnp.float32(1.0 / h.shape[-1])
        s = jnp.sum(h, axis=-1, keepdims=True)
        ss = jnp.sum(h * h, axis=-1, keepdims=True)
        mean = s * inv_d
        var = jnp.maximum(ss * inv_d - mean * mean, 0.0)
        rstd = lax.rsqrt(var + jnp.float32(eps))
        scale = rstd * g_ref[...].astype(jnp.float32)          # (tm, D)
        hn = (h - mean) * scale + be_ref[...].astype(jnp.float32)
        h_ref[...] = hn.astype(h_ref.dtype)

    # logits tile = h @ emb_tile^T + bias (contract on D; emb stays [V, D])
    acc = lax.dot_general(
        h_ref[...], emb_ref[...],
        dimension_numbers=(((1,), (1,)), ((), ())),
        preferred_element_type=jnp.float32,
    )
    o_ref[...] = (acc + dbias_ref[...].astype(jnp.float32)).astype(o_ref.dtype)


# ----------------------------------------- module wrapper -----------------------------------------
def bert_lm_head(hidden_states, emb_weight, params, *, eps, tm=256, tv=512):
    """hidden_states: [B, S, D]; emb_weight: [V, D] (tied input embedding).

    Returns logits [B, S, V].
    """
    B, S, D = hidden_states.shape
    V = emb_weight.shape[0]
    dtype = hidden_states.dtype
    itemsize = jnp.dtype(dtype).itemsize
    sublane = 8 if itemsize >= 4 else (16 if itemsize == 2 else 32)

    M = B * S
    x2d = hidden_states.reshape(M, D)

    # Clamp tiles to (padded) problem size; pad so the grid covers everything.
    tm_eff = min(tm, _round_up(M, sublane))
    Mp = _round_up(M, tm_eff)
    tv_eff = min(tv, _round_up(V, 128))
    Vp = _round_up(V, tv_eff)

    if Mp > M:
        x2d = jnp.pad(x2d, ((0, Mp - M), (0, 0)))

    # Native layouts — no transposes in the per-call path.
    w_dense = params["w_dense"].astype(dtype)                  # [D_out, D_in]
    b_dense = params["b_dense"].reshape(1, D).astype(dtype)
    gamma = params["ln_gamma"].reshape(1, D).astype(dtype)
    beta = params["ln_beta"].reshape(1, D).astype(dtype)
    emb = emb_weight.astype(dtype)                             # [V, D]
    dec_bias = params["dec_bias"].astype(dtype)
    if Vp > V:
        emb = jnp.pad(emb, ((0, Vp - V), (0, 0)))
        dec_bias = jnp.pad(dec_bias, (0, Vp - V))
    dec_bias = dec_bias.reshape(1, Vp)

    grid = (Mp // tm_eff, Vp // tv_eff)

    # VMEM budget: double-buffered tiles + resident h scratch, with headroom.
    vmem_bytes = 2 * itemsize * (
        tm_eff * D + D * D + 3 * D + tv_eff * D + tv_eff + tm_eff * tv_eff
    ) + itemsize * tm_eff * D
    vmem_limit = int(min(max(2 * vmem_bytes, 16 * 1024 * 1024), 100 * 1024 * 1024))

    cost = pl.CostEstimate(
        flops=2 * Mp * D * D + 2 * Mp * D * Vp,
        transcendentals=Mp * D,
        bytes_accessed=itemsize * (Mp * D + D * D + Vp * D + Mp * Vp + Vp + 4 * D),
    )

    logits2d = pl.pallas_call(
        functools.partial(_lm_head_kernel, eps=float(eps)),
        out_shape=jax.ShapeDtypeStruct((Mp, Vp), dtype),
        grid_spec=pltpu.PrefetchScalarGridSpec(
            num_scalar_prefetch=0,
            grid=grid,
            in_specs=[
                pl.BlockSpec((tm_eff, D), lambda i, j: (i, 0)),      # x rows (refetched only on new i)
                pl.BlockSpec((D, D), lambda i, j: (0, 0)),           # dense W (resident)
                pl.BlockSpec((1, D), lambda i, j: (0, 0)),           # dense bias
                pl.BlockSpec((1, D), lambda i, j: (0, 0)),           # LN gamma
                pl.BlockSpec((1, D), lambda i, j: (0, 0)),           # LN beta
                pl.BlockSpec((tv_eff, D), lambda i, j: (j, 0)),      # emb tile, native [V, D]
                pl.BlockSpec((1, tv_eff), lambda i, j: (0, j)),      # decoder bias tile
            ],
            out_specs=pl.BlockSpec((tm_eff, tv_eff), lambda i, j: (i, j)),
            scratch_shapes=[pltpu.VMEM((tm_eff, D), dtype)],
        ),
        compiler_params=pltpu.CompilerParams(
            dimension_semantics=("parallel", "arbitrary"),
            vmem_limit_bytes=vmem_limit,
        ),
        cost_estimate=cost,
    )(x2d, w_dense, b_dense, gamma, beta, emb, dec_bias)

    return logits2d[:M, :V].reshape(B, S, V)


if __name__ == "__main__":
    # Small shapes consistent with the module: batch=2, seq=8, dim_model=128, vocab=512
    B, S, D, V = 2, 8, 128, 512
    eps = 1e-12

    key = jax.random.PRNGKey(0)
    k = jax.random.split(key, 6)
    hidden_states = jax.random.normal(k[0], (B, S, D), dtype=jnp.float32)
    emb_weight = jax.random.normal(k[1], (V, D), dtype=jnp.float32) * 0.02

    params = {
        "w_dense": jax.random.normal(k[2], (D, D), dtype=jnp.float32) * 0.02,  # torch Linear: [out, in]
        "b_dense": jax.random.normal(k[3], (D,), dtype=jnp.float32) * 0.02,
        "ln_gamma": jnp.ones((D,), dtype=jnp.float32),
        "ln_beta": jnp.zeros((D,), dtype=jnp.float32),
        "dec_bias": jax.random.normal(k[4], (V,), dtype=jnp.float32) * 0.02,
        # decoder weight exists in the PyTorch module but is unused in forward (tied embedding)
    }

    fn = jax.jit(functools.partial(bert_lm_head, eps=eps))
    logits = fn(hidden_states, emb_weight, params)
    jax.block_until_ready(logits)

    # quick sanity check against plain-JAX reference
    x2d = hidden_states.reshape(B * S, D)
    h = x2d @ params["w_dense"].T + params["b_dense"]
    h = 0.5 * h * (1.0 + lax.erf(h / jnp.sqrt(2.0)))
    mu = h.mean(-1, keepdims=True)
    var = ((h - mu) ** 2).mean(-1, keepdims=True)
    h = (h - mu) / jnp.sqrt(var + eps) * params["ln_gamma"] + params["ln_beta"]
    ref = (h @ emb_weight.T + params["dec_bias"]).reshape(B, S, V)
    assert jnp.allclose(logits, ref, atol=1e-4, rtol=1e-4)

    print("KERNEL_OK")
</pallas_src>

<mosaic_0001>
module attributes {stable_mosaic.version = 11 : i64} {
  func.func @_lm_head_kernel(%arg0: i32, %arg1: i32, %arg2: memref<16x128xf32, #tpu.memory_space<vmem>>, %arg3: memref<128x128xf32, #tpu.memory_space<vmem>>, %arg4: memref<1x128xf32, #tpu.memory_space<vmem>>, %arg5: memref<1x128xf32, #tpu.memory_space<vmem>>, %arg6: memref<1x128xf32, #tpu.memory_space<vmem>>, %arg7: memref<512x128xf32, #tpu.memory_space<vmem>>, %arg8: memref<1x512xf32, #tpu.memory_space<vmem>>, %arg9: memref<16x512xf32, #tpu.memory_space<vmem>>, %arg10: memref<16x128xf32, #tpu.memory_space<vmem>>) attributes {dimension_semantics = [#tpu.dimension_semantics<parallel>, #tpu.dimension_semantics<arbitrary>], iteration_bounds = array<i64: 1, 1>, scalar_prefetch = 0 : i64, scratch_operands = 1 : i64, tpu.core_type = #tpu.core_type<tc>, window_params = [{transform_indices = @transform_0, window_bounds = array<i64: 16, 128>}, {pipeline_mode = #tpu.pipeline_mode<synchronous>, transform_indices = @transform_1, window_bounds = array<i64: 128, 128>}, {pipeline_mode = #tpu.pipeline_mode<synchronous>, transform_indices = @transform_2, window_bounds = array<i64: 1, 128>}, {pipeline_mode = #tpu.pipeline_mode<synchronous>, transform_indices = @transform_3, window_bounds = array<i64: 1, 128>}, {pipeline_mode = #tpu.pipeline_mode<synchronous>, transform_indices = @transform_4, window_bounds = array<i64: 1, 128>}, {transform_indices = @transform_5, window_bounds = array<i64: 512, 128>}, {transform_indices = @transform_6, window_bounds = array<i64: 1, 512>}, {transform_indices = @transform_7, window_bounds = array<i64: 16, 512>}]} {
    %c0_i32 = arith.constant 0 : i32
    %0 = arith.cmpi eq, %arg1, %c0_i32 : i32
    %1 = arith.extui %0 : i1 to i32
    %c0_i32_0 = arith.constant 0 : i32
    %2 = arith.cmpi ne, %1, %c0_i32_0 : i32
    scf.if %2 {
      %c0_8 = arith.constant 0 : index
      %c0_9 = arith.constant 0 : index
      %10 = vector.load %arg2[%c0_8, %c0_9] : memref<16x128xf32, #tpu.memory_space<vmem>>, vector<16x128xf32>
      %c0_10 = arith.constant 0 : index
      %c0_11 = arith.constant 0 : index
      %11 = vector.load %arg3[%c0_10, %c0_11] : memref<128x128xf32, #tpu.memory_space<vmem>>, vector<128x128xf32>
      %cst_12 = arith.constant dense<0.000000e+00> : vector<16x128xf32>
      %12 = tpu.matmul %10, %11, %cst_12 {dimension_numbers = #tpu.dot_dimension_numbers<[1], [1], [0], [0], [0, 0, 1, 0], [], []>} : vector<16x128xf32>, vector<128x128xf32>, vector<16x128xf32> -> vector<16x128xf32>
      %c0_13 = arith.constant 0 : index
      %c0_14 = arith.constant 0 : index
      %13 = vector.load %arg4[%c0_13, %c0_14] : memref<1x128xf32, #tpu.memory_space<vmem>>, vector<1x128xf32>
      %14 = vector.broadcast %13 : vector<1x128xf32> to vector<16x128xf32>
      %15 = arith.addf %12, %14 : vector<16x128xf32>
      %cst_15 = arith.constant 5.000000e-01 : f32
      %16 = vector.broadcast %cst_15 : f32 to vector<16x128xf32>
      %17 = arith.mulf %16, %15 : vector<16x128xf32>
      %cst_16 = arith.constant 0.707106769 : f32
      %18 = vector.broadcast %cst_16 : f32 to vector<16x128xf32>
      %19 = arith.mulf %15, %18 : vector<16x128xf32>
      %20 = math.erf %19 : vector<16x128xf32>
      %cst_17 = arith.constant 1.000000e+00 : f32
      %21 = vector.broadcast %cst_17 : f32 to vector<16x128xf32>
      %22 = arith.addf %21, %20 : vector<16x128xf32>
      %23 = arith.mulf %17, %22 : vector<16x128xf32>
      %cst_18 = arith.constant dense<0.000000e+00> : vector<16xf32>
      %24 = vector.multi_reduction <add>, %23, %cst_18 [1] : vector<16x128xf32> to vector<16xf32>
      %25 = vector.shape_cast %24 : vector<16xf32> to vector<16x1xf32>
      %26 = arith.mulf %23, %23 : vector<16x128xf32>
      %cst_19 = arith.constant dense<0.000000e+00> : vector<16xf32>
      %27 = vector.multi_reduction <add>, %26, %cst_19 [1] : vector<16x128xf32> to vector<16xf32>
      %28 = vector.shape_cast %27 : vector<16xf32> to vector<16x1xf32>
      %cst_20 = arith.constant 7.812500e-03 : f32
      %29 = vector.broadcast %cst_20 : f32 to vector<16x1xf32>
      %30 = arith.mulf %25, %29 : vector<16x1xf32>
      %cst_21 = arith.constant 7.812500e-03 : f32
      %31 = vector.broadcast %cst_21 : f32 to vector<16x1xf32>
      %32 = arith.mulf %28, %31 : vector<16x1xf32>
      %33 = arith.mulf %30, %30 : vector<16x1xf32>
      %34 = arith.subf %32, %33 : vector<16x1xf32>
      %cst_22 = arith.constant 0.000000e+00 : f32
      %35 = vector.broadcast %cst_22 : f32 to vector<16x1xf32>
      %36 = arith.maximumf %34, %35 : vector<16x1xf32>
      %cst_23 = arith.constant 9.99999996E-13 : f32
      %37 = vector.broadcast %cst_23 : f32 to vector<16x1xf32>
      %38 = arith.addf %36, %37 : vector<16x1xf32>
      %39 = math.rsqrt %38 : vector<16x1xf32>
      %c0_24 = arith.constant 0 : index
      %c0_25 = arith.constant 0 : index
      %40 = vector.load %arg5[%c0_24, %c0_25] : memref<1x128xf32, #tpu.memory_space<vmem>>, vector<1x128xf32>
      %41 = vector.broadcast %39 : vector<16x1xf32> to vector<16x128xf32>
      %42 = vector.broadcast %40 : vector<1x128xf32> to vector<16x128xf32>
      %43 = arith.mulf %41, %42 : vector<16x128xf32>
      %44 = vector.broadcast %30 : vector<16x1xf32> to vector<16x128xf32>
      %45 = arith.subf %23, %44 : vector<16x128xf32>
      %46 = arith.mulf %45, %43 : vector<16x128xf32>
      %c0_26 = arith.constant 0 : index
      %c0_27 = arith.constant 0 : index
      %47 = vector.load %arg6[%c0_26, %c0_27] : memref<1x128xf32, #tpu.memory_space<vmem>>, vector<1x128xf32>
      %48 = vector.broadcast %47 : vector<1x128xf32> to vector<16x128xf32>
      %49 = arith.addf %46, %48 : vector<16x128xf32>
      %c0_28 = arith.constant 0 : index
      %c0_29 = arith.constant 0 : index
      %50 = vector.load %arg10[%c0_28, %c0_29] : memref<16x128xf32, #tpu.memory_space<vmem>>, vector<16x128xf32>
      tpu.vector_store %arg10[%c0_28, %c0_29], %49 {strides = array<i32>} : memref<16x128xf32, #tpu.memory_space<vmem>>, vector<16x128xf32>,
    } else {
    }
    %c0 = arith.constant 0 : index
    %c0_1 = arith.constant 0 : index
    %3 = vector.load %arg10[%c0, %c0_1] : memref<16x128xf32, #tpu.memory_space<vmem>>, vector<16x128xf32>
    %c0_2 = arith.constant 0 : index
    %c0_3 = arith.constant 0 : index
    %4 = vector.load %arg7[%c0_2, %c0_3] : memref<512x128xf32, #tpu.memory_space<vmem>>, vector<512x128xf32>
    %cst = arith.constant dense<0.000000e+00> : vector<16x512xf32>
    %5 = tpu.matmul %3, %4, %cst {dimension_numbers = #tpu.dot_dimension_numbers<[1], [1], [0], [0], [0, 0, 1, 0], [], []>} : vector<16x128xf32>, vector<512x128xf32>, vector<16x512xf32> -> vector<16x512xf32>
    %c0_4 = arith.constant 0 : index
    %c0_5 = arith.constant 0 : index
    %6 = vector.load %arg8[%c0_4, %c0_5] : memref<1x512xf32, #tpu.memory_space<vmem>>, vector<1x512xf32>
    %7 = vector.broadcast %6 : vector<1x512xf32> to vector<16x512xf32>
    %8 = arith.addf %5, %7 : vector<16x512xf32>
    %c0_6 = arith.constant 0 : index
    %c0_7 = arith.constant 0 : index
    %9 = vector.load %arg9[%c0_6, %c0_7] : memref<16x512xf32, #tpu.memory_space<vmem>>, vector<16x512xf32>
    tpu.vector_store %arg9[%c0_6, %c0_7], %8 {strides = array<i32>} : memref<16x512xf32, #tpu.memory_space<vmem>>, vector<16x512xf32>,
    return
  }
  func.func @transform_0(%arg0: i32, %arg1: i32) -> (i32, i32) {
    %c0_i32 = arith.constant 0 : i32
    %c0_i32_0 = arith.constant 0 : i32
    return %arg0, %c0_i32 : i32, i32
  }
  func.func @transform_1(%arg0: i32, %arg1: i32) -> (i32, i32) {
    %c0_i32 = arith.constant 0 : i32
    %c0_i32_0 = arith.constant 0 : i32
    %c0_i32_1 = arith.constant 0 : i32
    return %c0_i32, %c0_i32_0 : i32, i32
  }
  func.func @transform_2(%arg0: i32, %arg1: i32) -> (i32, i32) {
    %c0_i32 = arith.constant 0 : i32
    %c0_i32_0 = arith.constant 0 : i32
    %c0_i32_1 = arith.constant 0 : i32
    return %c0_i32, %c0_i32_0 : i32, i32
  }
  func.func @transform_3(%arg0: i32, %arg1: i32) -> (i32, i32) {
    %c0_i32 = arith.constant 0 : i32
    %c0_i32_0 = arith.constant 0 : i32
    %c0_i32_1 = arith.constant 0 : i32
    return %c0_i32, %c0_i32_0 : i32, i32
  }
  func.func @transform_4(%arg0: i32, %arg1: i32) -> (i32, i32) {
    %c0_i32 = arith.constant 0 : i32
    %c0_i32_0 = arith.constant 0 : i32
    %c0_i32_1 = arith.constant 0 : i32
    return %c0_i32, %c0_i32_0 : i32, i32
  }
  func.func @transform_5(%arg0: i32, %arg1: i32) -> (i32, i32) {
    %c0_i32 = arith.constant 0 : i32
    %c0_i32_0 = arith.constant 0 : i32
    return %arg1, %c0_i32 : i32, i32
  }
  func.func @transform_6(%arg0: i32, %arg1: i32) -> (i32, i32) {
    %c0_i32 = arith.constant 0 : i32
    %c0_i32_0 = arith.constant 0 : i32
    return %c0_i32, %arg1 : i32, i32
  }
  func.func @transform_7(%arg0: i32, %arg1: i32) -> (i32, i32) {
    %c0_i32 = arith.constant 0 : i32
    return %arg0, %arg1 : i32, i32
  }
}

</mosaic_0001>

<llo_original>
// kernel: bert_lm_head.1
$region0: #{bert_lm_head.1}
  #allocation0 [shape = 'u32[]', space=smem, size = 0x4, offset = 0x4, fixed_abs, tag = 'smem constant byte address 0x4 - core index']
  #allocation1 [shape = 'u32[72,128]{1,0:T(1,128)}', space=vmem, size = 0x9000, scoped, tag = 'internal scratch']
  #allocation2 [shape = 'f32[16,128]{1,0:T(8,128)}', space=vmem, size = 0x2000, scoped, tag = 'scratch operand']
  %s0 = inlined_call_operand.hbm [shape: f32[16,128], index: 0, kind: input, shape index: {}]
  %s1 = inlined_call_operand.hbm [shape: f32[128,128], index: 1, kind: input, shape index: {}]
  %s2 = inlined_call_operand.vmem [shape: f32[1,128], index: 2, kind: input, shape index: {}]
  %s3 = inlined_call_operand.vmem [shape: f32[1,128], index: 3, kind: input, shape index: {}]
  %s4 = inlined_call_operand.vmem [shape: f32[1,128], index: 4, kind: input, shape index: {}]
  %s5 = inlined_call_operand.hbm [shape: f32[512,128], index: 5, kind: input, shape index: {}]
  %s6 = inlined_call_operand.vmem [shape: f32[1,512], index: 6, kind: input, shape index: {}]
  %s7 = inlined_call_operand.hbm [shape: f32[16,512], index: 7, kind: output, shape index: {}]
  %s8 = sld [smem:[#allocation0]]
  $region54: #{bert_lm_head.1} parent=0
    _
  %s10 = ssub.s32 1, %s8
  %s11 = scalar_select 0, %s10, %s8
  $region1: #{bert_lm_head.1} parent=0
    #allocation3 [shape = 'u8[8192]{0}', space=vmem, size = 0x2000, scoped, tag = 'input window, operand 0, single buffered']
    #allocation4 [shape = 's32[1]{0}', space=sflag, size = 0x4, scoped, tag = 'scoped memory for bert_lm_head.1']
    #allocation5 [shape = 's32[1]{0}', space=sflag, size = 0x4, scoped, tag = 'scoped memory for bert_lm_head.1']
    #allocation6 [shape = 'u8[65536]{0}', space=vmem, size = 0x10000, scoped, tag = 'input window, operand 1, single buffered']
    #allocation7 [shape = 's32[1]{0}', space=sflag, size = 0x4, scoped, tag = 'scoped memory for bert_lm_head.1']
    #allocation8 [shape = 'u8[262144]{0}', space=vmem, size = 0x40000, scoped, tag = 'input window, operand 5, single buffered']
    #allocation9 [shape = 'u8[32768]{0}', space=vmem, size = 0x8000, scoped, tag = 'output window, operand 0, single buffered']
    %12 = vsyncpa [#allocation4], 0
    %13 = vsyncpa [#allocation7], 0
    %14 = vsyncpa [#allocation5], 0
    // Predicated region
    $region2: #{bert_lm_head.1} parent=1 // pred_check
      _
    $region3: #{bert_lm_head.1} parent=1 // pred_check_branch
      %16 = sbr.rel (0) target = $region5
    $region4: #{bert_lm_head.1} parent=1 // pred_region
      %18 = vsyncadd [#allocation4], 0
      %s19 = sshll.u32 %s0, 4
      %s20 = int_to_ptr.hbm [resolvable:$true] %s19
      %s21 = sshll.u32 [#allocation3], 4
      %s22 = int_to_ptr.vmem [resolvable:$true] %s21
      %27 = dma.hbm_to_vmem [thread:$0]  %s20, 256, %s22, [#allocation4], 128, 128, 8
    $region5: #{bert_lm_head.1} parent=1 // pred_fallthru
      _
    // Predicated region
    $region6: #{bert_lm_head.1} parent=1 // pred_check
      _
    $region7: #{bert_lm_head.1} parent=1 // pred_check_branch
      %29 = sbr.rel (0) target = $region9
    $region8: #{bert_lm_head.1} parent=1 // pred_region
      %31 = vsyncadd [#allocation7], 0
      %s32 = sshll.u32 %s1, 4
      %s33 = int_to_ptr.hbm [resolvable:$true] %s32
      %s34 = sshll.u32 [#allocation6], 4
      %s35 = int_to_ptr.vmem [resolvable:$true] %s34
      %40 = dma.hbm_to_vmem [thread:$0]  %s33, 2048, %s35, [#allocation7], 128, 128, 8
    $region9: #{bert_lm_head.1} parent=1 // pred_fallthru
      _
    // Predicated region
    $region10: #{bert_lm_head.1} parent=1 // pred_check
      _
    $region11: #{bert_lm_head.1} parent=1 // pred_check_branch
      %42 = sbr.rel (0) target = $region13
    $region12: #{bert_lm_head.1} parent=1 // pred_region
      _
    $region13: #{bert_lm_head.1} parent=1 // pred_fallthru
      _
    // Predicated region
    $region14: #{bert_lm_head.1} parent=1 // pred_check
      _
    $region15: #{bert_lm_head.1} parent=1 // pred_check_branch
      %44 = sbr.rel (0) target = $region17
    $region16: #{bert_lm_head.1} parent=1 // pred_region
      _
    $region17: #{bert_lm_head.1} parent=1 // pred_fallthru
      _
    // Predicated region
    $region18: #{bert_lm_head.1} parent=1 // pred_check
      _
    $region19: #{bert_lm_head.1} parent=1 // pred_check_branch
      %46 = sbr.rel (0) target = $region21
    $region20: #{bert_lm_head.1} parent=1 // pred_region
      _
    $region21: #{bert_lm_head.1} parent=1 // pred_fallthru
      _
    // Predicated region
    $region22: #{bert_lm_head.1} parent=1 // pred_check
      _
    $region23: #{bert_lm_head.1} parent=1 // pred_check_branch
      %48 = sbr.rel (0) target = $region25
    $region24: #{bert_lm_head.1} parent=1 // pred_region
      %50 = vsyncadd [#allocation7], 0
      %s51 = sshll.u32 %s5, 4
      %s52 = int_to_ptr.hbm [resolvable:$true] %s51
      %s53 = sshll.u32 [#allocation8], 4
      %s54 = int_to_ptr.vmem [resolvable:$true] %s53
      %59 = dma.hbm_to_vmem [thread:$0]  %s52, 8192, %s54, [#allocation7], 128, 128, 8
    $region25: #{bert_lm_head.1} parent=1 // pred_fallthru
      _
    // Predicated region
    $region26: #{bert_lm_head.1} parent=1 // pred_check
      _
    $region27: #{bert_lm_head.1} parent=1 // pred_check_branch
      %61 = sbr.rel (0) target = $region29
    $region28: #{bert_lm_head.1} parent=1 // pred_region
      _
    $region29: #{bert_lm_head.1} parent=1 // pred_fallthru
      _
    // Predicated region
    $region30: #{bert_lm_head.1} parent=1 // pred_check
      _
    $region31: #{bert_lm_head.1} parent=1 // pred_check_branch
      %63 = sbr.rel (0) target = $region33
    $region32: #{bert_lm_head.1} parent=1 // pred_region
      %65 = dma.done [#allocation4], 256
    $region33: #{bert_lm_head.1} parent=1 // pred_fallthru
      _
    // Predicated region
    $region34: #{bert_lm_head.1} parent=1 // pred_check
      _
    $region35: #{bert_lm_head.1} parent=1 // pred_check_branch
      %67 = sbr.rel (0) target = $region37
    $region36: #{bert_lm_head.1} parent=1 // pred_region
      %69 = dma.done [#allocation7], 2048
    $region37: #{bert_lm_head.1} parent=1 // pred_fallthru
      _
    // Predicated region
    $region38: #{bert_lm_head.1} parent=1 // pred_check
      _
    $region39: #{bert_lm_head.1} parent=1 // pred_check_branch
      %71 = sbr.rel (0) target = $region41
    $region40: #{bert_lm_head.1} parent=1 // pred_region
      %73 = dma.done [#allocation7], 8192
    $region41: #{bert_lm_head.1} parent=1 // pred_fallthru
      _
    %p74 = scmp.eq.s32.totalorder 0, 0
    // Predicated region
    $region42: #{bert_lm_head.1} parent=1 // pred_check
      %p75 = pneg %p74
    $region43: #{bert_lm_head.1} parent=1 // pred_check_branch
      %77 = sbr.rel (%p75) target = $region45
    $region44: #{bert_lm_head.1} parent=1 // pred_region
      %v78 = vld [vmem:[#allocation3] sm:$0xff]
      %v79 = vld [vmem:[#allocation3 + $0x8] sm:$0xff]
      %v80 = vld [vmem:[#allocation6] sm:$0xff]
      %v81 = vld [vmem:[#allocation6 + $0x8] sm:$0xff]
      %v82 = vld [vmem:[#allocation6 + $0x10] sm:$0xff]
      %v83 = vld [vmem:[#allocation6 + $0x18] sm:$0xff]
      %v84 = vld [vmem:[#allocation6 + $0x20] sm:$0xff]
      %v85 = vld [vmem:[#allocation6 + $0x28] sm:$0xff]
      %v86 = vld [vmem:[#allocation6 + $0x30] sm:$0xff]
      %v87 = vld [vmem:[#allocation6 + $0x38] sm:$0xff]
      %v88 = vld [vmem:[#allocation6 + $0x40] sm:$0xff]
      %v89 = vld [vmem:[#allocation6 + $0x48] sm:$0xff]
      %v90 = vld [vmem:[#allocation6 + $0x50] sm:$0xff]
      %v91 = vld [vmem:[#allocation6 + $0x58] sm:$0xff]
      %v92 = vld [vmem:[#allocation6 + $0x60] sm:$0xff]
      %v93 = vld [vmem:[#allocation6 + $0x68] sm:$0xff]
      %v94 = vld [vmem:[#allocation6 + $0x70] sm:$0xff]
      %v95 = vld [vmem:[#allocation6 + $0x78] sm:$0xff]
      %v96 = vld [vmem:[%s2] sm:$0x1]
      %v98 = vperm.slane %v96, 0
      %100 = vmatpush.xpose.msra.mxu0 %v95
      %101 = vmatpush.xpose.msra.mxu0 %v94
      %102 = vmatpush.xpose.msra.mxu0 %v93
      %103 = vmatpush.xpose.msra.mxu0 %v92
      %104 = vmatpush.xpose.msra.mxu0 %v91
      %105 = vmatpush.xpose.msra.mxu0 %v90
      %106 = vmatpush.xpose.msra.mxu0 %v89
      %107 = vmatpush.xpose.msra.mxu0 %v88
      %108 = vmatpush.xpose.msra.mxu0 %v87
      %109 = vmatpush.xpose.msra.mxu0 %v86
      %110 = vmatpush.xpose.msra.mxu0 %v85
      %111 = vmatpush.xpose.msra.mxu0 %v84
      %112 = vmatpush.xpose.msra.mxu0 %v83
      %113 = vmatpush.xpose.msra.mxu0 %v82
      %114 = vmatpush.xpose.msra.mxu0 %v81
      %115 = vmatpush.xpose.msra.mxu0 %v80
      %116 = vmatmul.f32.gmra.mxu0 %v78
      %v117 = vpop.f32.mrf.mxu0
      %v118 = vadd.f32 %v98, %v117
      %119 = vmatmul.f32.gmra.mxu0 %v79
      %v120 = vpop.f32.mrf.mxu0
      %v121 = vadd.f32 %v98, %v120
      %122 = vdwg.mxu0
      %v123 = vmul.f32 %v118, 0.5
      %v124 = vmul.f32 %v121, 0.5
      %v125 = vmul.f32 %v118, 0.70710677
      %v126 = vmul.f32 %v121, 0.70710677
      %v127 = vmul.f32 %v125, %v125
      %v128 = vmin.f32 16.0, %v127
      %v129 = vmul.f32 %v128, 2.1237322e-06
      %v130 = vadd.f32 %v129, 0.00028619796
      %v131 = vmul.f32 %v128, %v130
      %v132 = vadd.f32 %v131, 0.0036580483
      %v133 = vmul.f32 %v128, %v132
      %v134 = vadd.f32 %v133, 0.05243302
      %v135 = vmul.f32 %v128, %v134
      %v136 = vadd.f32 %v135, 0.18741608
      %v137 = vmul.f32 %v128, %v136
      %v138 = vadd.f32 %v137, 1.1283791
      %v139 = vmul.f32 %v125, %v138
      %v140 = vmul.f32 %v128, 3.8918573e-05
      %v141 = vadd.f32 %v140, 0.001143296
      %v142 = vmul.f32 %v128, %v141
      %v143 = vadd.f32 %v142, 0.014752088
      %v144 = vmul.f32 %v128, %v143
      %v145 = vadd.f32 %v144, 0.112945676
      %v146 = vmul.f32 %v128, %v145
      %v147 = vadd.f32 %v146, 0.4994258
      %v148 = vmul.f32 %v128, %v147
      %v149 = vadd.f32 %v148, 1.0
      %v150 = vrcp.pop %v149
      %v151 = vmul.f32 %v149, %v150
      %v152 = vsub.f32 1.0, %v151
      %v153 = vmul.f32 %v150, %v152
      %v154 = vadd.f32 %v150, %v153
      %vm155 = vweird.f32 %v149
      %vm156 = vweird.f32 %v150
      %vm157 = vmor %vm155, %vm156
      %v158 = vsel %vm157, %v150, %v154
      %v159 = vand.u32 2147483647, %v149
      %vm160 = vcmp.eq.f32.partialorder %v159, 8.507059e+37
      %v161 = vand.u32 %v149, 2147483648
      %v162 = vor.u32 1.1754944e-38, %v161
      %v163 = vsel %vm160, %v162, %v158
      %v164 = vmul.f32 %v139, %v163
      %v165 = vmin.f32 %v164, 1.0
      %v166 = vmax.f32 %v165, -1.0
      %v167 = vmul.f32 %v126, %v126
      %v168 = vmin.f32 16.0, %v167
      %v169 = vmul.f32 %v168, 2.1237322e-06
      %v170 = vadd.f32 %v169, 0.00028619796
      %v171 = vmul.f32 %v168, %v170
      %v172 = vadd.f32 %v171, 0.0036580483
      %v173 = vmul.f32 %v168, %v172
      %v174 = vadd.f32 %v173, 0.05243302
      %v175 = vmul.f32 %v168, %v174
      %v176 = vadd.f32 %v175, 0.18741608
      %v177 = vmul.f32 %v168, %v176
      %v178 = vadd.f32 %v177, 1.1283791
      %v179 = vmul.f32 %v126, %v178
      %v180 = vmul.f32 %v168, 3.8918573e-05
      %v181 = vadd.f32 %v180, 0.001143296
      %v182 = vmul.f32 %v168, %v181
      %v183 = vadd.f32 %v182, 0.014752088
      %v184 = vmul.f32 %v168, %v183
      %v185 = vadd.f32 %v184, 0.112945676
      %v186 = vmul.f32 %v168, %v185
      %v187 = vadd.f32 %v186, 0.4994258
      %v188 = vmul.f32 %v168, %v187
      %v189 = vadd.f32 %v188, 1.0
      %v190 = vrcp.pop %v189
      %v191 = vmul.f32 %v189, %v190
      %v192 = vsub.f32 1.0, %v191
      %v193 = vmul.f32 %v190, %v192
      %v194 = vadd.f32 %v190, %v193
      %vm195 = vweird.f32 %v189
      %vm196 = vweird.f32 %v190
      %vm197 = vmor %vm195, %vm196
      %v198 = vsel %vm197, %v190, %v194
      %v199 = vand.u32 2147483647, %v189
      %vm200 = vcmp.eq.f32.partialorder %v199, 8.507059e+37
      %v201 = vand.u32 %v189, 2147483648
      %v202 = vor.u32 1.1754944e-38, %v201
      %v203 = vsel %vm200, %v202, %v198
      %v204 = vmul.f32 %v179, %v203
      %v205 = vmin.f32 %v204, 1.0
      %v206 = vmax.f32 %v205, -1.0
      %v207 = vadd.f32 %v166, 1.0
      %v208 = vadd.f32 %v206, 1.0
      %v209 = vmul.f32 %v123, %v207
      %v210 = vmul.f32 %v124, %v208
      %211 = vadd.xlane.f32.xlu0 %v209
      %v212 = vpop.xlane.xlu0 %211
      %213 = vadd.xlane.f32.xlu0 %v210
      %v214 = vpop.xlane.xlu0 %213
      %v215 = vmul.f32 %v209, %v209
      %v216 = vmul.f32 %v210, %v210
      %217 = vadd.xlane.f32.xlu0 %v215
      %v218 = vpop.xlane.xlu0 %217
      %219 = vadd.xlane.f32.xlu0 %v216
      %v220 = vpop.xlane.xlu0 %219
      %v221 = vmul.f32 %v212, 0.0078125
      %v222 = vmul.f32 %v214, 0.0078125
      %v223 = vmul.f32 %v218, 0.0078125
      %v224 = vmul.f32 %v220, 0.0078125
      %v225 = vmul.f32 %v221, %v221
      %v226 = vmul.f32 %v222, %v222
      %v227 = vsub.f32 %v223, %v225
      %v228 = vsub.f32 %v224, %v226
      %v229 = vmax.f32 %v227, 0.0
      %v230 = vmax.f32 %v228, 0.0
      %v231 = vadd.f32 %v229, 1e-12
      %v232 = vadd.f32 %v230, 1e-12
      %v233 = vrsqrt.pop %v231
      %v234 = vmul.f32 %v233, %v231
      %v235 = vmul.f32 %v234, %v233
      %v236 = vmul.f32 0.5, %v235
      %v237 = vsub.f32 1.5, %v236
      %v238 = vmul.f32 %v233, %v237
      %vm239 = vweird.f32 %v231
      %vm240 = vweird.f32 %v233
      %vm241 = vmor %vm239, %vm240
      %v242 = vsel %vm241, %v233, %v238
      %v243 = vrsqrt.pop %v232
      %v244 = vmul.f32 %v243, %v232
      %v245 = vmul.f32 %v244, %v243
      %v246 = vmul.f32 0.5, %v245
      %v247 = vsub.f32 1.5, %v246
      %v248 = vmul.f32 %v243, %v247
      %vm249 = vweird.f32 %v232
      %vm250 = vweird.f32 %v243
      %vm251 = vmor %vm249, %vm250
      %v252 = vsel %vm251, %v243, %v248
      %v253 = vld [vmem:[%s3] sm:$0x1]
      %v255 = vperm.slane %v253, 0
      %v257 = vmul.f32 %v242, %v255
      %v258 = vmul.f32 %v252, %v255
      %v259 = vsub.f32 %v209, %v221
      %v260 = vsub.f32 %v210, %v222
      %v261 = vmul.f32 %v259, %v257
      %v262 = vmul.f32 %v260, %v258
      %v263 = vld [vmem:[%s4] sm:$0x1]
      %v265 = vperm.slane %v263, 0
      %v267 = vadd.f32 %v261, %v265
      %v268 = vadd.f32 %v262, %v265
      %269 = vst [vmem:[#allocation2] sm:$0xff] %v267
      %270 = vst [vmem:[#allocation2 + $0x8] sm:$0xff] %v268
    $region45: #{bert_lm_head.1} parent=1 // pred_fallthru
      _
    %v271 = vld [vmem:[#allocation2] sm:$0xff]
    %v272 = vld [vmem:[#allocation2 + $0x8] sm:$0xff]
    %v273 = vld [vmem:[#allocation8] sm:$0xff]
    %v274 = vld [vmem:[#allocation8 + $0x8] sm:$0xff]
    %v275 = vld [vmem:[#allocation8 + $0x10] sm:$0xff]
    %v276 = vld [vmem:[#allocation8 + $0x18] sm:$0xff]
    %v277 = vld [vmem:[#allocation8 + $0x20] sm:$0xff]
    %v278 = vld [vmem:[#allocation8 + $0x28] sm:$0xff]
    %v279 = vld [vmem:[#allocation8 + $0x30] sm:$0xff]
    %v280 = vld [vmem:[#allocation8 + $0x38] sm:$0xff]
    %v281 = vld [vmem:[#allocation8 + $0x40] sm:$0xff]
    %v282 = vld [vmem:[#allocation8 + $0x48] sm:$0xff]
    %v283 = vld [vmem:[#allocation8 + $0x50] sm:$0xff]
    %v284 = vld [vmem:[#allocation8 + $0x58] sm:$0xff]
    %v285 = vld [vmem:[#allocation8 + $0x60] sm:$0xff]
    %v286 = vld [vmem:[#allocation8 + $0x68] sm:$0xff]
    %v287 = vld [vmem:[#allocation8 + $0x70] sm:$0xff]
    %v288 = vld [vmem:[#allocation8 + $0x78] sm:$0xff]
    %v289 = vld [vmem:[#allocation8 + $0x80] sm:$0xff]
    %v290 = vld [vmem:[#allocation8 + $0x88] sm:$0xff]
    %v291 = vld [vmem:[#allocation8 + $0x90] sm:$0xff]
    %v292 = vld [vmem:[#allocation8 + $0x98] sm:$0xff]
    %v293 = vld [vmem:[#allocation8 + $0xa0] sm:$0xff]
    %v294 = vld [vmem:[#allocation8 + $0xa8] sm:$0xff]
    %v295 = vld [vmem:[#allocation8 + $0xb0] sm:$0xff]
    %v296 = vld [vmem:[#allocation8 + $0xb8] sm:$0xff]
    %v297 = vld [vmem:[#allocation8 + $0xc0] sm:$0xff]
    %v298 = vld [vmem:[#allocation8 + $0xc8] sm:$0xff]
    %v299 = vld [vmem:[#allocation8 + $0xd0] sm:$0xff]
    %v300 = vld [vmem:[#allocation8 + $0xd8] sm:$0xff]
    %v301 = vld [vmem:[#allocation8 + $0xe0] sm:$0xff]
    %v302 = vld [vmem:[#allocation8 + $0xe8] sm:$0xff]
    %v303 = vld [vmem:[#allocation8 + $0xf0] sm:$0xff]
    %v304 = vld [vmem:[#allocation8 + $0xf8] sm:$0xff]
    %v305 = vld [vmem:[#allocation8 + $0x100] sm:$0xff]
    %v306 = vld [vmem:[#allocation8 + $0x108] sm:$0xff]
    %v307 = vld [vmem:[#allocation8 + $0x110] sm:$0xff]
    %v308 = vld [vmem:[#allocation8 + $0x118] sm:$0xff]
    %v309 = vld [vmem:[#allocation8 + $0x120] sm:$0xff]
    %v310 = vld [vmem:[#allocation8 + $0x128] sm:$0xff]
    %v311 = vld [vmem:[#allocation8 + $0x130] sm:$0xff]
    %v312 = vld [vmem:[#allocation8 + $0x138] sm:$0xff]
    %v313 = vld [vmem:[#allocation8 + $0x140] sm:$0xff]
    %v314 = vld [vmem:[#allocation8 + $0x148] sm:$0xff]
    %v315 = vld [vmem:[#allocation8 + $0x150] sm:$0xff]
    %v316 = vld [vmem:[#allocation8 + $0x158] sm:$0xff]
    %v317 = vld [vmem:[#allocation8 + $0x160] sm:$0xff]
    %v318 = vld [vmem:[#allocation8 + $0x168] sm:$0xff]
    %v319 = vld [vmem:[#allocation8 + $0x170] sm:$0xff]
    %v320 = vld [vmem:[#allocation8 + $0x178] sm:$0xff]
    %v321 = vld [vmem:[#allocation8 + $0x180] sm:$0xff]
    %v322 = vld [vmem:[#allocation8 + $0x188] sm:$0xff]
    %v323 = vld [vmem:[#allocation8 + $0x190] sm:$0xff]
    %v324 = vld [vmem:[#allocation8 + $0x198] sm:$0xff]
    %v325 = vld [vmem:[#allocation8 + $0x1a0] sm:$0xff]
    %v326 = vld [vmem:[#allocation8 + $0x1a8] sm:$0xff]
    %v327 = vld [vmem:[#allocation8 + $0x1b0] sm:$0xff]
    %v328 = vld [vmem:[#allocation8 + $0x1b8] sm:$0xff]
    %v329 = vld [vmem:[#allocation8 + $0x1c0] sm:$0xff]
    %v330 = vld [vmem:[#allocation8 + $0x1c8] sm:$0xff]
    %v331 = vld [vmem:[#allocation8 + $0x1d0] sm:$0xff]
    %v332 = vld [vmem:[#allocation8 + $0x1d8] sm:$0xff]
    %v333 = vld [vmem:[#allocation8 + $0x1e0] sm:$0xff]
    %v334 = vld [vmem:[#allocation8 + $0x1e8] sm:$0xff]
    %v335 = vld [vmem:[#allocation8 + $0x1f0] sm:$0xff]
    %v336 = vld [vmem:[#allocation8 + $0x1f8] sm:$0xff]
    %v337 = vld [vmem:[%s6] sm:$0xf]
    %v339 = vperm.slane %v337, 0
    %v340 = vperm.slane %v337, 1
    %v341 = vperm.slane %v337, 2
    %v342 = vperm.slane %v337, 3
    %347 = vmatpush.xpose.msra.mxu0 %v288
    %348 = vmatpush.xpose.msra.mxu0 %v287
    %349 = vmatpush.xpose.msra.mxu0 %v286
    %350 = vmatpush.xpose.msra.mxu0 %v285
    %351 = vmatpush.xpose.msra.mxu0 %v284
    %352 = vmatpush.xpose.msra.mxu0 %v283
    %353 = vmatpush.xpose.msra.mxu0 %v282
    %354 = vmatpush.xpose.msra.mxu0 %v281
    %355 = vmatpush.xpose.msra.mxu0 %v280
    %356 = vmatpush.xpose.msra.mxu0 %v279
    %357 = vmatpush.xpose.msra.mxu0 %v278
    %358 = vmatpush.xpose.msra.mxu0 %v277
    %359 = vmatpush.xpose.msra.mxu0 %v276
    %360 = vmatpush.xpose.msra.mxu0 %v275
    %361 = vmatpush.xpose.msra.mxu0 %v274
    %362 = vmatpush.xpose.msra.mxu0 %v273
    %363 = vmatmul.f32.gmra.mxu0 %v271
    %v364 = vpop.f32.mrf.mxu0
    %v365 = vadd.f32 %v339, %v364
    %366 = vmatmul.f32.gmra.mxu0 %v272
    %v367 = vpop.f32.mrf.mxu0
    %v368 = vadd.f32 %v339, %v367
    %369 = vdwg.mxu0
    %370 = vmatpush.xpose.msra.mxu0 %v304
    %371 = vmatpush.xpose.msra.mxu0 %v303
    %372 = vmatpush.xpose.msra.mxu0 %v302
    %373 = vmatpush.xpose.msra.mxu0 %v301
    %374 = vmatpush.xpose.msra.mxu0 %v300
    %375 = vmatpush.xpose.msra.mxu0 %v299
    %376 = vmatpush.xpose.msra.mxu0 %v298
    %377 = vmatpush.xpose.msra.mxu0 %v297
    %378 = vmatpush.xpose.msra.mxu0 %v296
    %379 = vmatpush.xpose.msra.mxu0 %v295
    %380 = vmatpush.xpose.msra.mxu0 %v294
    %381 = vmatpush.xpose.msra.mxu0 %v293
    %382 = vmatpush.xpose.msra.mxu0 %v292
    %383 = vmatpush.xpose.msra.mxu0 %v291
    %384 = vmatpush.xpose.msra.mxu0 %v290
    %385 = vmatpush.xpose.msra.mxu0 %v289
    %386 = vmatmul.f32.gmra.mxu0 %v271
    %v387 = vpop.f32.mrf.mxu0
    %v388 = vadd.f32 %v340, %v387
    %389 = vmatmul.f32.gmra.mxu0 %v272
    %v390 = vpop.f32.mrf.mxu0
    %v391 = vadd.f32 %v340, %v390
    %392 = vdwg.mxu0
    %393 = vmatpush.xpose.msra.mxu0 %v320
    %394 = vmatpush.xpose.msra.mxu0 %v319
    %395 = vmatpush.xpose.msra.mxu0 %v318
    %396 = vmatpush.xpose.msra.mxu0 %v317
    %397 = vmatpush.xpose.msra.mxu0 %v316
    %398 = vmatpush.xpose.msra.mxu0 %v315
    %399 = vmatpush.xpose.msra.mxu0 %v314
    %400 = vmatpush.xpose.msra.mxu0 %v313
    %401 = vmatpush.xpose.msra.mxu0 %v312
    %402 = vmatpush.xpose.msra.mxu0 %v311
    %403 = vmatpush.xpose.msra.mxu0 %v310
    %404 = vmatpush.xpose.msra.mxu0 %v309
    %405 = vmatpush.xpose.msra.mxu0 %v308
    %406 = vmatpush.xpose.msra.mxu0 %v307
    %407 = vmatpush.xpose.msra.mxu0 %v306
    %408 = vmatpush.xpose.msra.mxu0 %v305
    %409 = vmatmul.f32.gmra.mxu0 %v271
    %v410 = vpop.f32.mrf.mxu0
    %v411 = vadd.f32 %v341, %v410
    %412 = vmatmul.f32.gmra.mxu0 %v272
    %v413 = vpop.f32.mrf.mxu0
    %v414 = vadd.f32 %v341, %v413
    %415 = vdwg.mxu0
    %416 = vmatpush.xpose.msra.mxu0 %v336
    %417 = vmatpush.xpose.msra.mxu0 %v335
    %418 = vmatpush.xpose.msra.mxu0 %v334
    %419 = vmatpush.xpose.msra.mxu0 %v333
    %420 = vmatpush.xpose.msra.mxu0 %v332
    %421 = vmatpush.xpose.msra.mxu0 %v331
    %422 = vmatpush.xpose.msra.mxu0 %v330
    %423 = vmatpush.xpose.msra.mxu0 %v329
    %424 = vmatpush.xpose.msra.mxu0 %v328
    %425 = vmatpush.xpose.msra.mxu0 %v327
    %426 = vmatpush.xpose.msra.mxu0 %v326
    %427 = vmatpush.xpose.msra.mxu0 %v325
    %428 = vmatpush.xpose.msra.mxu0 %v324
    %429 = vmatpush.xpose.msra.mxu0 %v323
    %430 = vmatpush.xpose.msra.mxu0 %v322
    %431 = vmatpush.xpose.msra.mxu0 %v321
    %432 = vmatmul.f32.gmra.mxu0 %v271
    %v433 = vpop.f32.mrf.mxu0
    %v434 = vadd.f32 %v342, %v433
    %435 = vmatmul.f32.gmra.mxu0 %v272
    %v436 = vpop.f32.mrf.mxu0
    %v437 = vadd.f32 %v342, %v436
    %438 = vdwg.mxu0
    %439 = vst [vmem:[#allocation9] sm:$0xff] %v365
    %440 = vst [vmem:[#allocation9 + $0x8] sm:$0xff] %v388
    %441 = vst [vmem:[#allocation9 + $0x10] sm:$0xff] %v411
    %442 = vst [vmem:[#allocation9 + $0x18] sm:$0xff] %v434
    %443 = vst [vmem:[#allocation9 + $0x20] sm:$0xff] %v368
    %444 = vst [vmem:[#allocation9 + $0x28] sm:$0xff] %v391
    %445 = vst [vmem:[#allocation9 + $0x30] sm:$0xff] %v414
    %446 = vst [vmem:[#allocation9 + $0x38] sm:$0xff] %v437
    // Predicated region
    $region46: #{bert_lm_head.1} parent=1 // pred_check
      _
    $region47: #{bert_lm_head.1} parent=1 // pred_check_branch
      %448 = sbr.rel (0) target = $region49
    $region48: #{bert_lm_head.1} parent=1 // pred_region
      %450 = vsyncadd [#allocation5], 0
      %s451 = sshll.u32 [#allocation9], 4
      %s452 = int_to_ptr.vmem [resolvable:$true] %s451
      %s453 = sshll.u32 %s7, 4
      %s454 = int_to_ptr.hbm [resolvable:$true] %s453
      %459 = dma.vmem_to_hbm [thread:$0]  %s452, 1024, %s454, [#allocation5], 512, 512, 32
    $region49: #{bert_lm_head.1} parent=1 // pred_fallthru
      _
    // Predicated region
    $region50: #{bert_lm_head.1} parent=1 // pred_check
      _
    $region51: #{bert_lm_head.1} parent=1 // pred_check_branch
      %461 = sbr.rel (0) target = $region53
    $region52: #{bert_lm_head.1} parent=1 // pred_region
      %463 = dma.done [#allocation5], 1024
    $region53: #{bert_lm_head.1} parent=1 // pred_fallthru
      _
    %464 = vsyncpa [#allocation4], 1
    %465 = vsyncpa [#allocation7], 1
    %466 = vsyncpa [#allocation5], 1

</llo_original>
